<compile_context>
chip_gen: v7x
topology: tpu7x:2x2x1
jax: 0.10.0
libtpu: 0.0.40
codegen_flags: <defaults>
</compile_context>

<pallas_src>
import math

import jax
import jax.numpy as jnp
from jax import lax
from jax.experimental import pallas as pl
from jax.experimental.pallas import tpu as pltpu  # noqa: F401  (TPU backend target)

# --- small config (consistent with ProteinGenerativeConfig fields) ---
B = 2            # batch
S = 8            # seq length
H = 32           # hidden_size
NH = 4           # num_attention_heads
HD = H // NH     # attention_head_size
I = 64           # intermediate_size
EPS = 1e-12      # layer_norm_eps
BS = B * S       # batch-folded row count


def _layernorm(v, gamma, beta):
    mu = jnp.mean(v, axis=-1, keepdims=True)
    var = jnp.mean((v - mu) ** 2, axis=-1, keepdims=True)
    return (v - mu) * lax.rsqrt(var + EPS) * gamma + beta


def _gelu_exact(v):
    return 0.5 * v * (1.0 + lax.erf(v / jnp.float32(math.sqrt(2.0))))


def protein_layer_kernel(x_ref, mask_ref,
                         wqkv_ref, bqkv_ref,
                         w1_ref, b1_ref, w2_ref, b2_ref,
                         ln_ref,
                         out_ref):
    x = x_ref[...]                       # (BS, H)  batch-folded hidden states
    big_mask = mask_ref[...]             # (BS, BS) block-diagonal additive mask

    ln = ln_ref[...]                     # (4, H): ln1_g, ln1_b, ln2_g, ln2_b
    ln1g, ln1b = ln[0:1, :], ln[1:2, :]
    ln2g, ln2b = ln[2:3, :], ln[3:4, :]

    # --- LN1, then fused QKV projection (single MXU push) ---
    a = _layernorm(x, ln1g, ln1b)
    qkv = jnp.dot(a, wqkv_ref[...], preferred_element_type=jnp.float32) + bqkv_ref[...]
    q = qkv[:, 0:H]
    k = qkv[:, H:2 * H]
    v = qkv[:, 2 * H:3 * H]

    # --- block-diagonal head stacking: (BS, H) -> (NH*BS, H) where row-block h
    #     keeps only head h's HD columns.  Lets all heads share ONE score matmul
    #     and ONE PV matmul, with the PV result landing pre-concatenated.
    lane = lax.broadcasted_iota(jnp.int32, (1, H), 1)

    def block_diag_stack(m):
        parts = []
        for h in range(NH):
            sel = jnp.logical_and(lane >= h * HD, lane < (h + 1) * HD)
            parts.append(jnp.where(sel, m, 0.0))
        return jnp.concatenate(parts, axis=0)          # (NH*BS, H)

    k_diag = block_diag_stack(k)
    v_diag = block_diag_stack(v)

    # --- fused per-head scores: one MXU push, transpose folded into dot_general
    scale = 1.0 / math.sqrt(HD)
    scores = lax.dot_general(q, k_diag, (((1,), (1,)), ((), ())),
                             preferred_element_type=jnp.float32) * scale  # (BS, NH*BS)

    # --- per-head softmax (cheap VALU/XLU/EUP work on static lane slices;
    #     probs kept in registers, concatenated once) ---
    p_parts = []
    for h in range(NH):
        s_h = scores[:, h * BS:(h + 1) * BS] + big_mask
        s_h = s_h - jnp.max(s_h, axis=-1, keepdims=True)
        e_h = jnp.exp(s_h)
        p_parts.append(e_h / jnp.sum(e_h, axis=-1, keepdims=True))   # exact divide
    p_cat = jnp.concatenate(p_parts, axis=1)            # (BS, NH*BS)

    # --- fused PV: one MXU push producing the head-concatenated context ---
    ctx = jnp.dot(p_cat, v_diag, preferred_element_type=jnp.float32)  # (BS, H)

    # --- residual + LN1 (reused), feed-forward, residual + LN2 ---
    x2 = x + ctx
    x3 = _layernorm(x2, ln1g, ln1b)

    h1 = jnp.dot(x3, w1_ref[...], preferred_element_type=jnp.float32) + b1_ref[...]
    h1 = _gelu_exact(h1)
    ff = jnp.dot(h1, w2_ref[...], preferred_element_type=jnp.float32) + b2_ref[...]

    # single store of the final result
    out_ref[...] = _layernorm(x3 + ff, ln2g, ln2b)


# ---------------- wrapper-side (hoisted out of the hot path) ----------------

def prepare_fused_params(params):
    """Fuse QKV weights/biases and pack LayerNorm vectors — do ONCE at init."""
    w_qkv = jnp.concatenate([params["wq"], params["wk"], params["wv"]], axis=1)  # (H, 3H)
    b_qkv = jnp.concatenate([params["bq"], params["bk"], params["bv"]], axis=1)  # (1, 3H)
    ln_slab = jnp.concatenate(
        [params["ln1_g"], params["ln1_b"], params["ln2_g"], params["ln2_b"]], axis=0)  # (4, H)
    return {
        "w_qkv": w_qkv, "b_qkv": b_qkv, "ln": ln_slab,
        "w1": params["w1"], "b1": params["b1"],
        "w2": params["w2"], "b2": params["b2"],
    }


def build_block_diag_mask(mask):
    """(B,1,S) additive key mask -> (BS,BS) block-diagonal additive mask.

    Cross-batch key positions get -1e9 (prob -> 0) so all batches can share a
    single batch-folded score matrix.  Built once per (B, S, mask).
    """
    m = mask[:, 0, :]                                            # (B, S)
    eye4 = jnp.eye(B, dtype=bool)[:, None, :, None]              # (B,1,B,1)
    return jnp.where(
        eye4,
        jnp.broadcast_to(m[None, None, :, :], (B, S, B, S)),
        jnp.float32(-1e9),
    ).reshape(BS, BS)


def protein_generative_layer(x, big_mask, fused):
    """x: (B,S,H) f32; big_mask: (BS,BS); fused: output of prepare_fused_params."""
    xf = x.reshape(BS, H)

    cost = pl.CostEstimate(
        flops=2 * BS * H * 3 * H            # QKV
        + 2 * BS * H * NH * BS              # scores (fused, block-diag)
        + 2 * BS * NH * BS * H              # PV
        + 2 * BS * H * I + 2 * BS * I * H,  # FFN
        transcendentals=2 * BS * NH * BS + BS * I,
        bytes_accessed=4 * (BS * H * 2 + BS * BS + H * 3 * H + 3 * H
                            + H * I + I + I * H + H + 4 * H),
    )

    out = pl.pallas_call(
        protein_layer_kernel,
        out_shape=jax.ShapeDtypeStruct((BS, H), jnp.float32),
        cost_estimate=cost,
    )(xf, big_mask, fused["w_qkv"], fused["b_qkv"],
      fused["w1"], fused["b1"], fused["w2"], fused["b2"], fused["ln"])
    return out.reshape(B, S, H)


# ------------------------------ reference -----------------------------------

def reference_layer(x, mask, params):
    """Pure-JAX reference of the PyTorch forward (eval mode)."""
    def ln(v, g, b):
        mu = jnp.mean(v, axis=-1, keepdims=True)
        var = jnp.mean((v - mu) ** 2, axis=-1, keepdims=True)
        return (v - mu) / jnp.sqrt(var + EPS) * g + b

    a = ln(x, params["ln1_g"], params["ln1_b"])
    q = a @ params["wq"] + params["bq"]
    k = a @ params["wk"] + params["bk"]
    v = a @ params["wv"] + params["bv"]
    q = q.reshape(B, S, NH, HD).transpose(0, 2, 1, 3)
    k = k.reshape(B, S, NH, HD).transpose(0, 2, 1, 3)
    v = v.reshape(B, S, NH, HD).transpose(0, 2, 1, 3)
    scores = jnp.einsum("bhqd,bhkd->bhqk", q, k) / math.sqrt(HD)
    scores = scores + mask[:, None, :, :]            # (B,1,1,S) broadcast
    probs = jax.nn.softmax(scores, axis=-1)
    ctx = jnp.einsum("bhqk,bhkd->bhqd", probs, v)
    ctx = ctx.transpose(0, 2, 1, 3).reshape(B, S, H)
    x = x + ctx
    x = ln(x, params["ln1_g"], params["ln1_b"])
    ff = jax.nn.gelu(x @ params["w1"] + params["b1"], approximate=False) @ params["w2"] + params["b2"]
    return ln(x + ff, params["ln2_g"], params["ln2_b"])


def make_params(key):
    ks = jax.random.split(key, 8)
    scale = 0.05
    return {
        "wq": scale * jax.random.normal(ks[0], (H, H), jnp.float32),
        "wk": scale * jax.random.normal(ks[1], (H, H), jnp.float32),
        "wv": scale * jax.random.normal(ks[2], (H, H), jnp.float32),
        "w1": scale * jax.random.normal(ks[3], (H, I), jnp.float32),
        "w2": scale * jax.random.normal(ks[4], (I, H), jnp.float32),
        "bq": 0.01 * jax.random.normal(ks[5], (1, H), jnp.float32),
        "bk": jnp.zeros((1, H), jnp.float32),
        "bv": 0.01 * jax.random.normal(ks[6], (1, H), jnp.float32),
        "b1": jnp.zeros((1, I), jnp.float32),
        "b2": 0.01 * jax.random.normal(ks[7], (1, H), jnp.float32),
        "ln1_g": jnp.ones((1, H), jnp.float32),
        "ln1_b": jnp.zeros((1, H), jnp.float32),
        "ln2_g": jnp.ones((1, H), jnp.float32),
        "ln2_b": jnp.zeros((1, H), jnp.float32),
    }


if __name__ == "__main__":
    key = jax.random.PRNGKey(0)
    k_x, k_p, _ = jax.random.split(key, 3)
    x = jax.random.normal(k_x, (B, S, H), jnp.float32)
    params = make_params(k_p)

    # additive attention mask: mask out the last key position of batch element 1
    mask = jnp.zeros((B, 1, S), jnp.float32)
    mask = mask.at[1, 0, S - 1].set(-1e9)

    # hoisted out of the hot path (model init / per-mask), per perf feedback
    fused = prepare_fused_params(params)
    big_mask = build_block_diag_mask(mask)

    out = protein_generative_layer(x, big_mask, fused)
    out = jax.block_until_ready(out)

    ref = reference_layer(x, mask, params)
    assert out.shape == (B, S, H)
    max_err = float(jnp.max(jnp.abs(out - ref)))
    assert jnp.allclose(out, ref, atol=1e-4, rtol=1e-4), max_err

    print("KERNEL_OK")
</pallas_src>

<mosaic_0001>
module attributes {stable_mosaic.version = 11 : i64} {
  func.func @protein_layer_kernel(%arg0: memref<16x32xf32, #tpu.memory_space<vmem>>, %arg1: memref<16x16xf32, #tpu.memory_space<vmem>>, %arg2: memref<32x96xf32, #tpu.memory_space<vmem>>, %arg3: memref<1x96xf32, #tpu.memory_space<vmem>>, %arg4: memref<32x64xf32, #tpu.memory_space<vmem>>, %arg5: memref<1x64xf32, #tpu.memory_space<vmem>>, %arg6: memref<64x32xf32, #tpu.memory_space<vmem>>, %arg7: memref<1x32xf32, #tpu.memory_space<vmem>>, %arg8: memref<4x32xf32, #tpu.memory_space<vmem>>, %arg9: memref<16x32xf32, #tpu.memory_space<vmem>>) attributes {dimension_semantics = [], scalar_prefetch = 0 : i64, scratch_operands = 0 : i64, tpu.core_type = #tpu.core_type<tc>} {
    %c0 = arith.constant 0 : index
    %c0_0 = arith.constant 0 : index
    %0 = vector.load %arg0[%c0, %c0_0] : memref<16x32xf32, #tpu.memory_space<vmem>>, vector<16x32xf32>
    %c0_1 = arith.constant 0 : index
    %c0_2 = arith.constant 0 : index
    %1 = vector.load %arg1[%c0_1, %c0_2] : memref<16x16xf32, #tpu.memory_space<vmem>>, vector<16x16xf32>
    %c0_3 = arith.constant 0 : index
    %c0_4 = arith.constant 0 : index
    %2 = vector.load %arg8[%c0_3, %c0_4] : memref<4x32xf32, #tpu.memory_space<vmem>>, vector<4x32xf32>
    %3 = vector.extract_strided_slice %2 {offsets = [0, 0], sizes = [1, 32], strides = [1, 1]} : vector<4x32xf32> to vector<1x32xf32>
    %4 = vector.extract_strided_slice %2 {offsets = [1, 0], sizes = [1, 32], strides = [1, 1]} : vector<4x32xf32> to vector<1x32xf32>
    %5 = vector.extract_strided_slice %2 {offsets = [2, 0], sizes = [1, 32], strides = [1, 1]} : vector<4x32xf32> to vector<1x32xf32>
    %6 = vector.extract_strided_slice %2 {offsets = [3, 0], sizes = [1, 32], strides = [1, 1]} : vector<4x32xf32> to vector<1x32xf32>
    %cst = arith.constant dense<0.000000e+00> : vector<16xf32>
    %7 = vector.multi_reduction <add>, %0, %cst [1] : vector<16x32xf32> to vector<16xf32>
    %8 = vector.shape_cast %7 : vector<16xf32> to vector<16x1xf32>
    %cst_5 = arith.constant 3.200000e+01 : f32
    %9 = vector.broadcast %cst_5 : f32 to vector<16x1xf32>
    %10 = arith.divf %8, %9 : vector<16x1xf32>
    %11 = vector.broadcast %10 : vector<16x1xf32> to vector<16x32xf32>
    %12 = arith.subf %0, %11 : vector<16x32xf32>
    %13 = arith.mulf %12, %12 : vector<16x32xf32>
    %cst_6 = arith.constant dense<0.000000e+00> : vector<16xf32>
    %14 = vector.multi_reduction <add>, %13, %cst_6 [1] : vector<16x32xf32> to vector<16xf32>
    %15 = vector.shape_cast %14 : vector<16xf32> to vector<16x1xf32>
    %cst_7 = arith.constant 3.200000e+01 : f32
    %16 = vector.broadcast %cst_7 : f32 to vector<16x1xf32>
    %17 = arith.divf %15, %16 : vector<16x1xf32>
    %18 = vector.broadcast %10 : vector<16x1xf32> to vector<16x32xf32>
    %19 = arith.subf %0, %18 : vector<16x32xf32>
    %cst_8 = arith.constant 9.99999996E-13 : f32
    %20 = vector.broadcast %cst_8 : f32 to vector<16x1xf32>
    %21 = arith.addf %17, %20 : vector<16x1xf32>
    %22 = math.rsqrt %21 : vector<16x1xf32>
    %23 = vector.broadcast %22 : vector<16x1xf32> to vector<16x32xf32>
    %24 = arith.mulf %19, %23 : vector<16x32xf32>
    %25 = vector.broadcast %3 : vector<1x32xf32> to vector<16x32xf32>
    %26 = arith.mulf %24, %25 : vector<16x32xf32>
    %27 = vector.broadcast %4 : vector<1x32xf32> to vector<16x32xf32>
    %28 = arith.addf %26, %27 : vector<16x32xf32>
    %c0_9 = arith.constant 0 : index
    %c0_10 = arith.constant 0 : index
    %29 = vector.load %arg2[%c0_9, %c0_10] : memref<32x96xf32, #tpu.memory_space<vmem>>, vector<32x96xf32>
    %cst_11 = arith.constant dense<0.000000e+00> : vector<16x96xf32>
    %30 = tpu.matmul %28, %29, %cst_11 {dimension_numbers = #tpu.dot_dimension_numbers<[1], [0], [0], [1], [0, 0, 1, 1], [], []>} : vector<16x32xf32>, vector<32x96xf32>, vector<16x96xf32> -> vector<16x96xf32>
    %c0_12 = arith.constant 0 : index
    %c0_13 = arith.constant 0 : index
    %31 = vector.load %arg3[%c0_12, %c0_13] : memref<1x96xf32, #tpu.memory_space<vmem>>, vector<1x96xf32>
    %32 = vector.broadcast %31 : vector<1x96xf32> to vector<16x96xf32>
    %33 = arith.addf %30, %32 : vector<16x96xf32>
    %34 = vector.extract_strided_slice %33 {offsets = [0, 0], sizes = [16, 32], strides = [1, 1]} : vector<16x96xf32> to vector<16x32xf32>
    %35 = vector.extract_strided_slice %33 {offsets = [0, 32], sizes = [16, 32], strides = [1, 1]} : vector<16x96xf32> to vector<16x32xf32>
    %36 = vector.extract_strided_slice %33 {offsets = [0, 64], sizes = [16, 32], strides = [1, 1]} : vector<16x96xf32> to vector<16x32xf32>
    %37 = tpu.iota {dimensions = array<i32: 1>} : vector<1x32xi32>
    %c0_i32 = arith.constant 0 : i32
    %38 = vector.broadcast %c0_i32 : i32 to vector<1x32xi32>
    %39 = arith.cmpi sge, %37, %38 : vector<1x32xi32>
    %c8_i32 = arith.constant 8 : i32
    %40 = vector.broadcast %c8_i32 : i32 to vector<1x32xi32>
    %41 = arith.cmpi slt, %37, %40 : vector<1x32xi32>
    %42 = arith.andi %39, %41 : vector<1x32xi1>
    %cst_14 = arith.constant 0.000000e+00 : f32
    %43 = vector.shape_cast %42 : vector<1x32xi1> to vector<1x32xi1>
    %44 = vector.broadcast %43 : vector<1x32xi1> to vector<16x32xi1>
    %45 = vector.broadcast %cst_14 : f32 to vector<16x32xf32>
    %46 = arith.select %44, %35, %45 : vector<16x32xi1>, vector<16x32xf32>
    %c8_i32_15 = arith.constant 8 : i32
    %47 = vector.broadcast %c8_i32_15 : i32 to vector<1x32xi32>
    %48 = arith.cmpi sge, %37, %47 : vector<1x32xi32>
    %c16_i32 = arith.constant 16 : i32
    %49 = vector.broadcast %c16_i32 : i32 to vector<1x32xi32>
    %50 = arith.cmpi slt, %37, %49 : vector<1x32xi32>
    %51 = arith.andi %48, %50 : vector<1x32xi1>
    %cst_16 = arith.constant 0.000000e+00 : f32
    %52 = vector.shape_cast %51 : vector<1x32xi1> to vector<1x32xi1>
    %53 = vector.broadcast %52 : vector<1x32xi1> to vector<16x32xi1>
    %54 = vector.broadcast %cst_16 : f32 to vector<16x32xf32>
    %55 = arith.select %53, %35, %54 : vector<16x32xi1>, vector<16x32xf32>
    %c16_i32_17 = arith.constant 16 : i32
    %56 = vector.broadcast %c16_i32_17 : i32 to vector<1x32xi32>
    %57 = arith.cmpi sge, %37, %56 : vector<1x32xi32>
    %c24_i32 = arith.constant 24 : i32
    %58 = vector.broadcast %c24_i32 : i32 to vector<1x32xi32>
    %59 = arith.cmpi slt, %37, %58 : vector<1x32xi32>
    %60 = arith.andi %57, %59 : vector<1x32xi1>
    %cst_18 = arith.constant 0.000000e+00 : f32
    %61 = vector.shape_cast %60 : vector<1x32xi1> to vector<1x32xi1>
    %62 = vector.broadcast %61 : vector<1x32xi1> to vector<16x32xi1>
    %63 = vector.broadcast %cst_18 : f32 to vector<16x32xf32>
    %64 = arith.select %62, %35, %63 : vector<16x32xi1>, vector<16x32xf32>
    %c24_i32_19 = arith.constant 24 : i32
    %65 = vector.broadcast %c24_i32_19 : i32 to vector<1x32xi32>
    %66 = arith.cmpi sge, %37, %65 : vector<1x32xi32>
    %c32_i32 = arith.constant 32 : i32
    %67 = vector.broadcast %c32_i32 : i32 to vector<1x32xi32>
    %68 = arith.cmpi slt, %37, %67 : vector<1x32xi32>
    %69 = arith.andi %66, %68 : vector<1x32xi1>
    %cst_20 = arith.constant 0.000000e+00 : f32
    %70 = vector.shape_cast %69 : vector<1x32xi1> to vector<1x32xi1>
    %71 = vector.broadcast %70 : vector<1x32xi1> to vector<16x32xi1>
    %72 = vector.broadcast %cst_20 : f32 to vector<16x32xf32>
    %73 = arith.select %71, %35, %72 : vector<16x32xi1>, vector<16x32xf32>
    %74 = tpu.concatenate %46, %55, %64, %73 in 0 : vector<16x32xf32>, vector<16x32xf32>, vector<16x32xf32>, vector<16x32xf32> -> vector<64x32xf32>
    %c0_i32_21 = arith.constant 0 : i32
    %75 = vector.broadcast %c0_i32_21 : i32 to vector<1x32xi32>
    %76 = arith.cmpi sge, %37, %75 : vector<1x32xi32>
    %c8_i32_22 = arith.constant 8 : i32
    %77 = vector.broadcast %c8_i32_22 : i32 to vector<1x32xi32>
    %78 = arith.cmpi slt, %37, %77 : vector<1x32xi32>
    %79 = arith.andi %76, %78 : vector<1x32xi1>
    %cst_23 = arith.constant 0.000000e+00 : f32
    %80 = vector.shape_cast %79 : vector<1x32xi1> to vector<1x32xi1>
    %81 = vector.broadcast %80 : vector<1x32xi1> to vector<16x32xi1>
    %82 = vector.broadcast %cst_23 : f32 to vector<16x32xf32>
    %83 = arith.select %81, %36, %82 : vector<16x32xi1>, vector<16x32xf32>
    %c8_i32_24 = arith.constant 8 : i32
    %84 = vector.broadcast %c8_i32_24 : i32 to vector<1x32xi32>
    %85 = arith.cmpi sge, %37, %84 : vector<1x32xi32>
    %c16_i32_25 = arith.constant 16 : i32
    %86 = vector.broadcast %c16_i32_25 : i32 to vector<1x32xi32>
    %87 = arith.cmpi slt, %37, %86 : vector<1x32xi32>
    %88 = arith.andi %85, %87 : vector<1x32xi1>
    %cst_26 = arith.constant 0.000000e+00 : f32
    %89 = vector.shape_cast %88 : vector<1x32xi1> to vector<1x32xi1>
    %90 = vector.broadcast %89 : vector<1x32xi1> to vector<16x32xi1>
    %91 = vector.broadcast %cst_26 : f32 to vector<16x32xf32>
    %92 = arith.select %90, %36, %91 : vector<16x32xi1>, vector<16x32xf32>
    %c16_i32_27 = arith.constant 16 : i32
    %93 = vector.broadcast %c16_i32_27 : i32 to vector<1x32xi32>
    %94 = arith.cmpi sge, %37, %93 : vector<1x32xi32>
    %c24_i32_28 = arith.constant 24 : i32
    %95 = vector.broadcast %c24_i32_28 : i32 to vector<1x32xi32>
    %96 = arith.cmpi slt, %37, %95 : vector<1x32xi32>
    %97 = arith.andi %94, %96 : vector<1x32xi1>
    %cst_29 = arith.constant 0.000000e+00 : f32
    %98 = vector.shape_cast %97 : vector<1x32xi1> to vector<1x32xi1>
    %99 = vector.broadcast %98 : vector<1x32xi1> to vector<16x32xi1>
    %100 = vector.broadcast %cst_29 : f32 to vector<16x32xf32>
    %101 = arith.select %99, %36, %100 : vector<16x32xi1>, vector<16x32xf32>
    %c24_i32_30 = arith.constant 24 : i32
    %102 = vector.broadcast %c24_i32_30 : i32 to vector<1x32xi32>
    %103 = arith.cmpi sge, %37, %102 : vector<1x32xi32>
    %c32_i32_31 = arith.constant 32 : i32
    %104 = vector.broadcast %c32_i32_31 : i32 to vector<1x32xi32>
    %105 = arith.cmpi slt, %37, %104 : vector<1x32xi32>
    %106 = arith.andi %103, %105 : vector<1x32xi1>
    %cst_32 = arith.constant 0.000000e+00 : f32
    %107 = vector.shape_cast %106 : vector<1x32xi1> to vector<1x32xi1>
    %108 = vector.broadcast %107 : vector<1x32xi1> to vector<16x32xi1>
    %109 = vector.broadcast %cst_32 : f32 to vector<16x32xf32>
    %110 = arith.select %108, %36, %109 : vector<16x32xi1>, vector<16x32xf32>
    %111 = tpu.concatenate %83, %92, %101, %110 in 0 : vector<16x32xf32>, vector<16x32xf32>, vector<16x32xf32>, vector<16x32xf32> -> vector<64x32xf32>
    %cst_33 = arith.constant dense<0.000000e+00> : vector<16x64xf32>
    %112 = tpu.matmul %34, %74, %cst_33 {dimension_numbers = #tpu.dot_dimension_numbers<[1], [1], [0], [0], [0, 0, 1, 0], [], []>} : vector<16x32xf32>, vector<64x32xf32>, vector<16x64xf32> -> vector<16x64xf32>
    %cst_34 = arith.constant 0.353553385 : f32
    %113 = vector.broadcast %cst_34 : f32 to vector<16x64xf32>
    %114 = arith.mulf %112, %113 : vector<16x64xf32>
    %115 = vector.extract_strided_slice %114 {offsets = [0, 0], sizes = [16, 16], strides = [1, 1]} : vector<16x64xf32> to vector<16x16xf32>
    %116 = arith.addf %115, %1 : vector<16x16xf32>
    %cst_35 = arith.constant dense<0xFF800000> : vector<16xf32>
    %117 = vector.multi_reduction <maximumf>, %116, %cst_35 [1] : vector<16x16xf32> to vector<16xf32>
    %118 = vector.shape_cast %117 : vector<16xf32> to vector<16x1xf32>
    %119 = vector.broadcast %118 : vector<16x1xf32> to vector<16x16xf32>
    %120 = arith.subf %116, %119 : vector<16x16xf32>
    %121 = math.exp %120 : vector<16x16xf32>
    %cst_36 = arith.constant dense<0.000000e+00> : vector<16xf32>
    %122 = vector.multi_reduction <add>, %121, %cst_36 [1] : vector<16x16xf32> to vector<16xf32>
    %123 = vector.shape_cast %122 : vector<16xf32> to vector<16x1xf32>
    %124 = vector.broadcast %123 : vector<16x1xf32> to vector<16x16xf32>
    %125 = arith.divf %121, %124 : vector<16x16xf32>
    %126 = vector.extract_strided_slice %114 {offsets = [0, 16], sizes = [16, 16], strides = [1, 1]} : vector<16x64xf32> to vector<16x16xf32>
    %127 = arith.addf %126, %1 : vector<16x16xf32>
    %cst_37 = arith.constant dense<0xFF800000> : vector<16xf32>
    %128 = vector.multi_reduction <maximumf>, %127, %cst_37 [1] : vector<16x16xf32> to vector<16xf32>
    %129 = vector.shape_cast %128 : vector<16xf32> to vector<16x1xf32>
    %130 = vector.broadcast %129 : vector<16x1xf32> to vector<16x16xf32>
    %131 = arith.subf %127, %130 : vector<16x16xf32>
    %132 = math.exp %131 : vector<16x16xf32>
    %cst_38 = arith.constant dense<0.000000e+00> : vector<16xf32>
    %133 = vector.multi_reduction <add>, %132, %cst_38 [1] : vector<16x16xf32> to vector<16xf32>
    %134 = vector.shape_cast %133 : vector<16xf32> to vector<16x1xf32>
    %135 = vector.broadcast %134 : vector<16x1xf32> to vector<16x16xf32>
    %136 = arith.divf %132, %135 : vector<16x16xf32>
    %137 = vector.extract_strided_slice %114 {offsets = [0, 32], sizes = [16, 16], strides = [1, 1]} : vector<16x64xf32> to vector<16x16xf32>
    %138 = arith.addf %137, %1 : vector<16x16xf32>
    %cst_39 = arith.constant dense<0xFF800000> : vector<16xf32>
    %139 = vector.multi_reduction <maximumf>, %138, %cst_39 [1] : vector<16x16xf32> to vector<16xf32>
    %140 = vector.shape_cast %139 : vector<16xf32> to vector<16x1xf32>
    %141 = vector.broadcast %140 : vector<16x1xf32> to vector<16x16xf32>
    %142 = arith.subf %138, %141 : vector<16x16xf32>
    %143 = math.exp %142 : vector<16x16xf32>
    %cst_40 = arith.constant dense<0.000000e+00> : vector<16xf32>
    %144 = vector.multi_reduction <add>, %143, %cst_40 [1] : vector<16x16xf32> to vector<16xf32>
    %145 = vector.shape_cast %144 : vector<16xf32> to vector<16x1xf32>
    %146 = vector.broadcast %145 : vector<16x1xf32> to vector<16x16xf32>
    %147 = arith.divf %143, %146 : vector<16x16xf32>
    %148 = vector.extract_strided_slice %114 {offsets = [0, 48], sizes = [16, 16], strides = [1, 1]} : vector<16x64xf32> to vector<16x16xf32>
    %149 = arith.addf %148, %1 : vector<16x16xf32>
    %cst_41 = arith.constant dense<0xFF800000> : vector<16xf32>
    %150 = vector.multi_reduction <maximumf>, %149, %cst_41 [1] : vector<16x16xf32> to vector<16xf32>
    %151 = vector.shape_cast %150 : vector<16xf32> to vector<16x1xf32>
    %152 = vector.broadcast %151 : vector<16x1xf32> to vector<16x16xf32>
    %153 = arith.subf %149, %152 : vector<16x16xf32>
    %154 = math.exp %153 : vector<16x16xf32>
    %cst_42 = arith.constant dense<0.000000e+00> : vector<16xf32>
    %155 = vector.multi_reduction <add>, %154, %cst_42 [1] : vector<16x16xf32> to vector<16xf32>
    %156 = vector.shape_cast %155 : vector<16xf32> to vector<16x1xf32>
    %157 = vector.broadcast %156 : vector<16x1xf32> to vector<16x16xf32>
    %158 = arith.divf %154, %157 : vector<16x16xf32>
    %159 = tpu.concatenate %125, %136, %147, %158 in 1 : vector<16x16xf32>, vector<16x16xf32>, vector<16x16xf32>, vector<16x16xf32> -> vector<16x64xf32>
    %cst_43 = arith.constant dense<0.000000e+00> : vector<16x32xf32>
    %160 = tpu.matmul %159, %111, %cst_43 {dimension_numbers = #tpu.dot_dimension_numbers<[1], [0], [0], [1], [0, 0, 1, 1], [], []>} : vector<16x64xf32>, vector<64x32xf32>, vector<16x32xf32> -> vector<16x32xf32>
    %161 = arith.addf %0, %160 : vector<16x32xf32>
    %cst_44 = arith.constant dense<0.000000e+00> : vector<16xf32>
    %162 = vector.multi_reduction <add>, %161, %cst_44 [1] : vector<16x32xf32> to vector<16xf32>
    %163 = vector.shape_cast %162 : vector<16xf32> to vector<16x1xf32>
    %cst_45 = arith.constant 3.200000e+01 : f32
    %164 = vector.broadcast %cst_45 : f32 to vector<16x1xf32>
    %165 = arith.divf %163, %164 : vector<16x1xf32>
    %166 = vector.broadcast %165 : vector<16x1xf32> to vector<16x32xf32>
    %167 = arith.subf %161, %166 : vector<16x32xf32>
    %168 = arith.mulf %167, %167 : vector<16x32xf32>
    %cst_46 = arith.constant dense<0.000000e+00> : vector<16xf32>
    %169 = vector.multi_reduction <add>, %168, %cst_46 [1] : vector<16x32xf32> to vector<16xf32>
    %170 = vector.shape_cast %169 : vector<16xf32> to vector<16x1xf32>
    %cst_47 = arith.constant 3.200000e+01 : f32
    %171 = vector.broadcast %cst_47 : f32 to vector<16x1xf32>
    %172 = arith.divf %170, %171 : vector<16x1xf32>
    %173 = vector.broadcast %165 : vector<16x1xf32> to vector<16x32xf32>
    %174 = arith.subf %161, %173 : vector<16x32xf32>
    %cst_48 = arith.constant 9.99999996E-13 : f32
    %175 = vector.broadcast %cst_48 : f32 to vector<16x1xf32>
    %176 = arith.addf %172, %175 : vector<16x1xf32>
    %177 = math.rsqrt %176 : vector<16x1xf32>
    %178 = vector.broadcast %177 : vector<16x1xf32> to vector<16x32xf32>
    %179 = arith.mulf %174, %178 : vector<16x32xf32>
    %180 = vector.broadcast %3 : vector<1x32xf32> to vector<16x32xf32>
    %181 = arith.mulf %179, %180 : vector<16x32xf32>
    %182 = vector.broadcast %4 : vector<1x32xf32> to vector<16x32xf32>
    %183 = arith.addf %181, %182 : vector<16x32xf32>
    %c0_49 = arith.constant 0 : index
    %c0_50 = arith.constant 0 : index
    %184 = vector.load %arg4[%c0_49, %c0_50] : memref<32x64xf32, #tpu.memory_space<vmem>>, vector<32x64xf32>
    %cst_51 = arith.constant dense<0.000000e+00> : vector<16x64xf32>
    %185 = tpu.matmul %183, %184, %cst_51 {dimension_numbers = #tpu.dot_dimension_numbers<[1], [0], [0], [1], [0, 0, 1, 1], [], []>} : vector<16x32xf32>, vector<32x64xf32>, vector<16x64xf32> -> vector<16x64xf32>
    %c0_52 = arith.constant 0 : index
    %c0_53 = arith.constant 0 : index
    %186 = vector.load %arg5[%c0_52, %c0_53] : memref<1x64xf32, #tpu.memory_space<vmem>>, vector<1x64xf32>
    %187 = vector.broadcast %186 : vector<1x64xf32> to vector<16x64xf32>
    %188 = arith.addf %185, %187 : vector<16x64xf32>
    %cst_54 = arith.constant 5.000000e-01 : f32
    %189 = vector.broadcast %cst_54 : f32 to vector<16x64xf32>
    %190 = arith.mulf %189, %188 : vector<16x64xf32>
    %cst_55 = arith.constant 1.41421354 : f32
    %191 = vector.broadcast %cst_55 : f32 to vector<16x64xf32>
    %192 = arith.divf %188, %191 : vector<16x64xf32>
    %193 = math.erf %192 : vector<16x64xf32>
    %cst_56 = arith.constant 1.000000e+00 : f32
    %194 = vector.broadcast %cst_56 : f32 to vector<16x64xf32>
    %195 = arith.addf %194, %193 : vector<16x64xf32>
    %196 = arith.mulf %190, %195 : vector<16x64xf32>
    %c0_57 = arith.constant 0 : index
    %c0_58 = arith.constant 0 : index
    %197 = vector.load %arg6[%c0_57, %c0_58] : memref<64x32xf32, #tpu.memory_space<vmem>>, vector<64x32xf32>
    %cst_59 = arith.constant dense<0.000000e+00> : vector<16x32xf32>
    %198 = tpu.matmul %196, %197, %cst_59 {dimension_numbers = #tpu.dot_dimension_numbers<[1], [0], [0], [1], [0, 0, 1, 1], [], []>} : vector<16x64xf32>, vector<64x32xf32>, vector<16x32xf32> -> vector<16x32xf32>
    %c0_60 = arith.constant 0 : index
    %c0_61 = arith.constant 0 : index
    %199 = vector.load %arg7[%c0_60, %c0_61] : memref<1x32xf32, #tpu.memory_space<vmem>>, vector<1x32xf32>
    %200 = vector.broadcast %199 : vector<1x32xf32> to vector<16x32xf32>
    %201 = arith.addf %198, %200 : vector<16x32xf32>
    %202 = arith.addf %183, %201 : vector<16x32xf32>
    %cst_62 = arith.constant dense<0.000000e+00> : vector<16xf32>
    %203 = vector.multi_reduction <add>, %202, %cst_62 [1] : vector<16x32xf32> to vector<16xf32>
    %204 = vector.shape_cast %203 : vector<16xf32> to vector<16x1xf32>
    %cst_63 = arith.constant 3.200000e+01 : f32
    %205 = vector.broadcast %cst_63 : f32 to vector<16x1xf32>
    %206 = arith.divf %204, %205 : vector<16x1xf32>
    %207 = vector.broadcast %206 : vector<16x1xf32> to vector<16x32xf32>
    %208 = arith.subf %202, %207 : vector<16x32xf32>
    %209 = arith.mulf %208, %208 : vector<16x32xf32>
    %cst_64 = arith.constant dense<0.000000e+00> : vector<16xf32>
    %210 = vector.multi_reduction <add>, %209, %cst_64 [1] : vector<16x32xf32> to vector<16xf32>
    %211 = vector.shape_cast %210 : vector<16xf32> to vector<16x1xf32>
    %cst_65 = arith.constant 3.200000e+01 : f32
    %212 = vector.broadcast %cst_65 : f32 to vector<16x1xf32>
    %213 = arith.divf %211, %212 : vector<16x1xf32>
    %214 = vector.broadcast %206 : vector<16x1xf32> to vector<16x32xf32>
    %215 = arith.subf %202, %214 : vector<16x32xf32>
    %cst_66 = arith.constant 9.99999996E-13 : f32
    %216 = vector.broadcast %cst_66 : f32 to vector<16x1xf32>
    %217 = arith.addf %213, %216 : vector<16x1xf32>
    %218 = math.rsqrt %217 : vector<16x1xf32>
    %219 = vector.broadcast %218 : vector<16x1xf32> to vector<16x32xf32>
    %220 = arith.mulf %215, %219 : vector<16x32xf32>
    %221 = vector.broadcast %5 : vector<1x32xf32> to vector<16x32xf32>
    %222 = arith.mulf %220, %221 : vector<16x32xf32>
    %223 = vector.broadcast %6 : vector<1x32xf32> to vector<16x32xf32>
    %224 = arith.addf %222, %223 : vector<16x32xf32>
    %c0_67 = arith.constant 0 : index
    %c0_68 = arith.constant 0 : index
    %225 = vector.load %arg9[%c0_67, %c0_68] : memref<16x32xf32, #tpu.memory_space<vmem>>, vector<16x32xf32>
    tpu.vector_store %arg9[%c0_67, %c0_68], %224 {strides = array<i32>} : memref<16x32xf32, #tpu.memory_space<vmem>>, vector<16x32xf32>,
    return
  }
}

</mosaic_0001>

<llo_original>
// kernel: tpu_custom_call.1
$region0: #{tpu_custom_call.1}
  #allocation0 [shape = 'u32[]', space=smem, size = 0x4, offset = 0x4, fixed_abs, tag = 'smem constant byte address 0x4 - core index']
  #allocation1 [shape = 'u32[144,128]{1,0:T(1,128)}', space=vmem, size = 0x12000, scoped, tag = 'internal scratch']
  %s0 = inlined_call_operand.vmem [shape: f32[16,32], index: 0, kind: input, shape index: {}]
  %s1 = inlined_call_operand.vmem [shape: f32[16,16], index: 1, kind: input, shape index: {}]
  %s2 = inlined_call_operand.vmem [shape: f32[32,96], index: 2, kind: input, shape index: {}]
  %s3 = inlined_call_operand.vmem [shape: f32[1,96], index: 3, kind: input, shape index: {}]
  %s4 = inlined_call_operand.vmem [shape: f32[32,64], index: 4, kind: input, shape index: {}]
  %s5 = inlined_call_operand.vmem [shape: f32[1,64], index: 5, kind: input, shape index: {}]
  %s6 = inlined_call_operand.vmem [shape: f32[64,32], index: 6, kind: input, shape index: {}]
  %s7 = inlined_call_operand.vmem [shape: f32[1,32], index: 7, kind: input, shape index: {}]
  %s8 = inlined_call_operand.vmem [shape: f32[4,32], index: 8, kind: input, shape index: {}]
  %s9 = inlined_call_operand.hbm [shape: f32[16,32], index: 9, kind: output, shape index: {}]
  %s10 = sld [smem:[#allocation0]]
  $region46: #{tpu_custom_call.1} parent=0
    _
  %s12 = ssub.s32 1, %s10
  %s13 = scalar_select 0, %s12, %s10
  $region1: #{tpu_custom_call.1} parent=0
    #allocation2 [shape = 'u8[8192]{0}', space=vmem, size = 0x2000, scoped, tag = 'output window, operand 0, single buffered']
    #allocation3 [shape = 's32[1]{0}', space=sflag, size = 0x4, scoped, tag = 'scoped memory for tpu_custom_call.1']
    %14 = vsyncpa [#allocation3], 0
    // Predicated region
    $region2: #{tpu_custom_call.1} parent=1 // pred_check
      _
    $region3: #{tpu_custom_call.1} parent=1 // pred_check_branch
      %16 = sbr.rel (0) target = $region5
    $region4: #{tpu_custom_call.1} parent=1 // pred_region
      _
    $region5: #{tpu_custom_call.1} parent=1 // pred_fallthru
      _
    // Predicated region
    $region6: #{tpu_custom_call.1} parent=1 // pred_check
      _
    $region7: #{tpu_custom_call.1} parent=1 // pred_check_branch
      %18 = sbr.rel (0) target = $region9
    $region8: #{tpu_custom_call.1} parent=1 // pred_region
      _
    $region9: #{tpu_custom_call.1} parent=1 // pred_fallthru
      _
    // Predicated region
    $region10: #{tpu_custom_call.1} parent=1 // pred_check
      _
    $region11: #{tpu_custom_call.1} parent=1 // pred_check_branch
      %20 = sbr.rel (0) target = $region13
    $region12: #{tpu_custom_call.1} parent=1 // pred_region
      _
    $region13: #{tpu_custom_call.1} parent=1 // pred_fallthru
      _
    // Predicated region
    $region14: #{tpu_custom_call.1} parent=1 // pred_check
      _
    $region15: #{tpu_custom_call.1} parent=1 // pred_check_branch
      %22 = sbr.rel (0) target = $region17
    $region16: #{tpu_custom_call.1} parent=1 // pred_region
      _
    $region17: #{tpu_custom_call.1} parent=1 // pred_fallthru
      _
    // Predicated region
    $region18: #{tpu_custom_call.1} parent=1 // pred_check
      _
    $region19: #{tpu_custom_call.1} parent=1 // pred_check_branch
      %24 = sbr.rel (0) target = $region21
    $region20: #{tpu_custom_call.1} parent=1 // pred_region
      _
    $region21: #{tpu_custom_call.1} parent=1 // pred_fallthru
      _
    // Predicated region
    $region22: #{tpu_custom_call.1} parent=1 // pred_check
      _
    $region23: #{tpu_custom_call.1} parent=1 // pred_check_branch
      %26 = sbr.rel (0) target = $region25
    $region24: #{tpu_custom_call.1} parent=1 // pred_region
      _
    $region25: #{tpu_custom_call.1} parent=1 // pred_fallthru
      _
    // Predicated region
    $region26: #{tpu_custom_call.1} parent=1 // pred_check
      _
    $region27: #{tpu_custom_call.1} parent=1 // pred_check_branch
      %28 = sbr.rel (0) target = $region29
    $region28: #{tpu_custom_call.1} parent=1 // pred_region
      _
    $region29: #{tpu_custom_call.1} parent=1 // pred_fallthru
      _
    // Predicated region
    $region30: #{tpu_custom_call.1} parent=1 // pred_check
      _
    $region31: #{tpu_custom_call.1} parent=1 // pred_check_branch
      %30 = sbr.rel (0) target = $region33
    $region32: #{tpu_custom_call.1} parent=1 // pred_region
      _
    $region33: #{tpu_custom_call.1} parent=1 // pred_fallthru
      _
    // Predicated region
    $region34: #{tpu_custom_call.1} parent=1 // pred_check
      _
    $region35: #{tpu_custom_call.1} parent=1 // pred_check_branch
      %32 = sbr.rel (0) target = $region37
    $region36: #{tpu_custom_call.1} parent=1 // pred_region
      _
    $region37: #{tpu_custom_call.1} parent=1 // pred_fallthru
      _
    %v33 = vld [vmem:[%s0] sm:$0xff]
    %v34 = vld [vmem:[%s0 + $0x8] sm:$0xff]
    %v35 = vld [vmem:[%s1] sm:$0xff]
    %v36 = vld [vmem:[%s1 + $0x8] sm:$0xff]
    %v37 = vld [vmem:[%s8] sm:$0xf]
    %vm38 = vcmask 261120
    %v39 = vsel %vm38, %v33, 0.0
    %40 = vadd.xlane.f32.xlu0 %v39
    %v41 = vpop.xlane.xlu0 %40
    %v42 = vsel %vm38, %v34, 0.0
    %43 = vadd.xlane.f32.xlu0 %v42
    %v44 = vpop.xlane.xlu0 %43
    %v45 = vrcp.pop 32.0
    %v46 = vmul.f32 %v41, %v45
    %v47 = vmul.f32 %v44, %v45
    %v48 = vsub.f32 %v33, %v46
    %v49 = vsub.f32 %v34, %v47
    %v50 = vmul.f32 %v48, %v48
    %v51 = vmul.f32 %v49, %v49
    %v52 = vsel %vm38, %v50, 0.0
    %53 = vadd.xlane.f32.xlu0 %v52
    %v54 = vpop.xlane.xlu0 %53
    %v55 = vsel %vm38, %v51, 0.0
    %56 = vadd.xlane.f32.xlu0 %v55
    %v57 = vpop.xlane.xlu0 %56
    %v58 = vmul.f32 %v54, %v45
    %v59 = vmul.f32 %v57, %v45
    %v60 = vadd.f32 %v58, 1e-12
    %v61 = vadd.f32 %v59, 1e-12
    %v62 = vrsqrt.pop %v60
    %v63 = vrsqrt.pop %v61
    %v64 = vmul.f32 %v48, %v62
    %v65 = vmul.f32 %v49, %v63
    %v66 = vlaneseq
    %v67 = vshrl.u32 %v66, 7
    %v68 = vsub.s32 0, %v67
    %v69 = vrot.slane %v37, %v68
    %v70 = vmul.f32 %v64, %v69
    %v71 = vmul.f32 %v65, %v69
    %v72 = vlaneseq
    %v73 = vshrl.u32 %v72, 7
    %v74 = vsub.s32 1, %v73
    %v75 = vrot.slane %v37, %v74
    %v76 = vadd.f32 %v70, %v75
    %v77 = vadd.f32 %v71, %v75
    %v78 = vld [vmem:[%s2] sm:$0xff]
    %v79 = vld [vmem:[%s2 + $0x8] sm:$0xff]
    %v80 = vld [vmem:[%s2 + $0x10] sm:$0xff]
    %v81 = vld [vmem:[%s2 + $0x18] sm:$0xff]
    %v82 = vld [vmem:[%s3] sm:$0x1]
    %v84 = vlaneseq
    %v85 = vshrl.u32 %v84, 7
    %v86 = vsub.s32 0, %v85
    %v87 = vrot.slane %v82, %v86
    %v90 = vsel %vm38, %v76, 0
    %v93 = vsel %vm38, %v77, 0
    %95 = vmatprep.subr.mxu0 0.0
    %96 = vmatpush1.msra.mxu0 %v78
    %97 = vmatprep.subr.mxu0 0.0
    %98 = vmatpush1.msra.mxu0 %v79
    %99 = vmatprep.subr.mxu0 0.0
    %100 = vmatpush1.msra.mxu0 %v80
    %101 = vmatprep.subr.mxu0 0.0
    %102 = vmatpush1.msra.mxu0 %v81
    %103 = vmatprep.subr.mxu0 0.0
    %104 = vmatpush1.msra.mxu0 0.0
    %105 = vmatprep.subr.mxu0 0.0
    %106 = vmatpush1.msra.mxu0 0.0
    %107 = vmatprep.subr.mxu0 0.0
    %108 = vmatpush1.msra.mxu0 0.0
    %109 = vmatprep.subr.mxu0 0.0
    %110 = vmatpush1.msra.mxu0 0.0
    %111 = vmatprep.subr.mxu0 0.0
    %112 = vmatpush1.msra.mxu0 0.0
    %113 = vmatprep.subr.mxu0 0.0
    %114 = vmatpush1.msra.mxu0 0.0
    %115 = vmatprep.subr.mxu0 0.0
    %116 = vmatpush1.msra.mxu0 0.0
    %117 = vmatprep.subr.mxu0 0.0
    %118 = vmatpush1.msra.mxu0 0.0
    %119 = vmatprep.subr.mxu0 0.0
    %120 = vmatpush1.msra.mxu0 0.0
    %121 = vmatprep.subr.mxu0 0.0
    %122 = vmatpush1.msra.mxu0 0.0
    %123 = vmatprep.subr.mxu0 0.0
    %124 = vmatpush1.msra.mxu0 0.0
    %125 = vmatprep.subr.mxu0 0.0
    %126 = vmatpush1.msra.mxu0 0.0
    %127 = vmatprep.subr.mxu0 0.0
    %128 = vmatpush1.msra.mxu0 0.0
    %129 = vmatprep.subr.mxu0 0.0
    %130 = vmatpush1.msra.mxu0 0.0
    %131 = vmatprep.subr.mxu0 0.0
    %132 = vmatpush1.msra.mxu0 0.0
    %133 = vmatprep.subr.mxu0 0.0
    %134 = vmatpush1.msra.mxu0 0.0
    %135 = vmatprep.subr.mxu0 0.0
    %136 = vmatpush1.msra.mxu0 0.0
    %137 = vmatprep.subr.mxu0 0.0
    %138 = vmatpush1.msra.mxu0 0.0
    %139 = vmatprep.subr.mxu0 0.0
    %140 = vmatpush1.msra.mxu0 0.0
    %141 = vmatprep.subr.mxu0 0.0
    %142 = vmatpush1.msra.mxu0 0.0
    %143 = vmatprep.subr.mxu0 0.0
    %144 = vmatpush1.msra.mxu0 0.0
    %145 = vmatprep.subr.mxu0 0.0
    %146 = vmatpush1.msra.mxu0 0.0
    %147 = vmatprep.subr.mxu0 0.0
    %148 = vmatpush1.msra.mxu0 0.0
    %149 = vmatprep.subr.mxu0 0.0
    %150 = vmatpush1.msra.mxu0 0.0
    %151 = vmatprep.subr.mxu0 0.0
    %152 = vmatpush1.msra.mxu0 0.0
    %153 = vmatprep.subr.mxu0 0.0
    %154 = vmatpush1.msra.mxu0 0.0
    %155 = vmatprep.subr.mxu0 0.0
    %156 = vmatpush1.msra.mxu0 0.0
    %157 = vmatprep.subr.mxu0 0.0
    %158 = vmatpush1.msra.mxu0 0.0
    %159 = vmatprep.mubr.f32.mxu0 0.0
    %160 = vmatmul.mubr.f32.gmra.mrb[0].mxu0 %v90
    %v161 = vpop.f32.mrb[0].mxu0
    %v162 = vadd.f32 %v87, %v161
    %v163 = vpop.f32.mrb[0].mxu0
    %164 = vmatprep.mubr.f32.mxu0 0.0
    %165 = vmatmul.mubr.f32.gmra.mrb[0].mxu0 %v93
    %v166 = vpop.f32.mrb[0].mxu0
    %v167 = vadd.f32 %v87, %v166
    %v168 = vpop.f32.mrb[0].mxu0
    %169 = vdwg.mxu0
    %v170 = vlaneseq
    %v171 = vand.u32 %v170, 127
    %vm172 = vcmp.ge.s32.totalorder %v171, 0
    %vm173 = vcmp.lt.s32.totalorder %v171, 8
    %vm174 = vmand %vm172, %vm173
    %v175 = vsel %vm174, 1, 0
    %vm176 = vcmp.eq.s32.totalorder %v175, 1
    %179 = vrot.lane.b32.xlu0 %v162, 96
    %v180 = vpop.permute.xlu0 %179
    %181 = vrot.lane.b32.xlu0 %v167, 96
    %v182 = vpop.permute.xlu0 %181
    %v185 = vsel %vm176, %v180, 0.0
    %v186 = vsel %vm176, %v182, 0.0
    %vm187 = vcmp.ge.s32.totalorder %v171, 8
    %vm188 = vcmp.lt.s32.totalorder %v171, 16
    %vm189 = vmand %vm187, %vm188
    %v190 = vsel %vm189, 1, 0
    %vm191 = vcmp.eq.s32.totalorder %v190, 1
    %v192 = vsel %vm191, %v180, 0.0
    %v193 = vsel %vm191, %v182, 0.0
    %vm194 = vcmp.ge.s32.totalorder %v171, 16
    %vm195 = vcmp.lt.s32.totalorder %v171, 24
    %vm196 = vmand %vm194, %vm195
    %v197 = vsel %vm196, 1, 0
    %vm198 = vcmp.eq.s32.totalorder %v197, 1
    %v199 = vsel %vm198, %v180, 0.0
    %v200 = vsel %vm198, %v182, 0.0
    %vm201 = vcmp.ge.s32.totalorder %v171, 24
    %vm202 = vcmp.lt.s32.totalorder %v171, 32
    %vm203 = vmand %vm201, %vm202
    %v204 = vsel %vm203, 1, 0
    %vm205 = vcmp.eq.s32.totalorder %v204, 1
    %v206 = vsel %vm205, %v180, 0.0
    %v207 = vsel %vm205, %v182, 0.0
    %208 = vrot.lane.b32.xlu0 %v162, 64
    %v209 = vpop.permute.xlu0 %208
    %210 = vrot.lane.b32.xlu0 %v167, 64
    %v211 = vpop.permute.xlu0 %210
    %v214 = vsel %vm176, %v209, 0.0
    %v215 = vsel %vm176, %v211, 0.0
    %v216 = vsel %vm191, %v209, 0.0
    %v217 = vsel %vm191, %v211, 0.0
    %v218 = vsel %vm198, %v209, 0.0
    %v219 = vsel %vm198, %v211, 0.0
    %v220 = vsel %vm205, %v209, 0.0
    %v221 = vsel %vm205, %v211, 0.0
    %v222 = vsel %vm38, %v162, 0
    %v224 = vsel %vm38, %v167, 0
    %v227 = vsel %vm38, %v185, 0
    %v230 = vsel %vm38, %v186, 0
    %v233 = vsel %vm38, %v192, 0
    %v236 = vsel %vm38, %v193, 0
    %v239 = vsel %vm38, %v199, 0
    %v242 = vsel %vm38, %v200, 0
    %v245 = vsel %vm38, %v206, 0
    %v248 = vsel %vm38, %v207, 0
    %250 = vmatprep.subr.mxu0 0.0
    %251 = vmatpush1.xpose.msra.mxu0 %v227
    %252 = vmatprep.subr.mxu0 0.0
    %253 = vmatpush1.xpose.msra.mxu0 %v230
    %254 = vmatprep.subr.mxu0 0.0
    %255 = vmatpush1.xpose.msra.mxu0 %v233
    %256 = vmatprep.subr.mxu0 0.0
    %257 = vmatpush1.xpose.msra.mxu0 %v236
    %258 = vmatprep.subr.mxu0 0.0
    %259 = vmatpush1.xpose.msra.mxu0 %v239
    %260 = vmatprep.subr.mxu0 0.0
    %261 = vmatpush1.xpose.msra.mxu0 %v242
    %262 = vmatprep.subr.mxu0 0.0
    %263 = vmatpush1.xpose.msra.mxu0 %v245
    %264 = vmatprep.subr.mxu0 0.0
    %265 = vmatpush1.xpose.msra.mxu0 %v248
    %266 = vmatprep.subr.mxu0 0.0
    %267 = vmatpush1.xpose.msra.mxu0 0.0
    %268 = vmatprep.subr.mxu0 0.0
    %269 = vmatpush1.xpose.msra.mxu0 0.0
    %270 = vmatprep.subr.mxu0 0.0
    %271 = vmatpush1.xpose.msra.mxu0 0.0
    %272 = vmatprep.subr.mxu0 0.0
    %273 = vmatpush1.xpose.msra.mxu0 0.0
    %274 = vmatprep.subr.mxu0 0.0
    %275 = vmatpush1.xpose.msra.mxu0 0.0
    %276 = vmatprep.subr.mxu0 0.0
    %277 = vmatpush1.xpose.msra.mxu0 0.0
    %278 = vmatprep.subr.mxu0 0.0
    %279 = vmatpush1.xpose.msra.mxu0 0.0
    %280 = vmatprep.subr.mxu0 0.0
    %281 = vmatpush1.xpose.msra.mxu0 0.0
    %282 = vmatprep.subr.mxu0 0.0
    %283 = vmatpush1.xpose.msra.mxu0 0.0
    %284 = vmatprep.subr.mxu0 0.0
    %285 = vmatpush1.xpose.msra.mxu0 0.0
    %286 = vmatprep.subr.mxu0 0.0
    %287 = vmatpush1.xpose.msra.mxu0 0.0
    %288 = vmatprep.subr.mxu0 0.0
    %289 = vmatpush1.xpose.msra.mxu0 0.0
    %290 = vmatprep.subr.mxu0 0.0
    %291 = vmatpush1.xpose.msra.mxu0 0.0
    %292 = vmatprep.subr.mxu0 0.0
    %293 = vmatpush1.xpose.msra.mxu0 0.0
    %294 = vmatprep.subr.mxu0 0.0
    %295 = vmatpush1.xpose.msra.mxu0 0.0
    %296 = vmatprep.subr.mxu0 0.0
    %297 = vmatpush1.xpose.msra.mxu0 0.0
    %298 = vmatprep.subr.mxu0 0.0
    %299 = vmatpush1.xpose.msra.mxu0 0.0
    %300 = vmatprep.subr.mxu0 0.0
    %301 = vmatpush1.xpose.msra.mxu0 0.0
    %302 = vmatprep.subr.mxu0 0.0
    %303 = vmatpush1.xpose.msra.mxu0 0.0
    %304 = vmatprep.subr.mxu0 0.0
    %305 = vmatpush1.xpose.msra.mxu0 0.0
    %306 = vmatprep.subr.mxu0 0.0
    %307 = vmatpush1.xpose.msra.mxu0 0.0
    %308 = vmatprep.subr.mxu0 0.0
    %309 = vmatpush1.xpose.msra.mxu0 0.0
    %310 = vmatprep.subr.mxu0 0.0
    %311 = vmatpush1.xpose.msra.mxu0 0.0
    %312 = vmatprep.subr.mxu0 0.0
    %313 = vmatpush1.xpose.msra.mxu0 0.0
    %314 = vmatprep.mubr.f32.mxu0 0.0
    %315 = vmatmul.mubr.f32.gmra.mrb[0].mxu0 %v222
    %v316 = vpop.f32.mrb[0].mxu0
    %v317 = vadd.f32 0.0, %v316
    %v318 = vpop.f32.mrb[0].mxu0
    %319 = vmatprep.mubr.f32.mxu0 0.0
    %320 = vmatmul.mubr.f32.gmra.mrb[0].mxu0 %v224
    %v321 = vpop.f32.mrb[0].mxu0
    %v322 = vadd.f32 0.0, %v321
    %v323 = vpop.f32.mrb[0].mxu0
    %324 = vdwg.mxu0
    %v325 = vmul.f32 %v317, 0.35355338
    %v326 = vmul.f32 %v322, 0.35355338
    %v327 = vadd.f32 %v325, %v35
    %v328 = vadd.f32 %v326, %v36
    %vm329 = vcmask 130048
    %v330 = vsel %vm329, %v327, -inf
    %331 = vmax.xlane.f32.xlu0 %v330
    %v332 = vpop.xlane.xlu0 %331
    %v333 = vsel %vm329, %v328, -inf
    %334 = vmax.xlane.f32.xlu0 %v333
    %v335 = vpop.xlane.xlu0 %334
    %v336 = vsub.f32 %v327, %v332
    %v337 = vsub.f32 %v328, %v335
    %v338 = vmul.f32 %v336, 1.442695
    %v339 = vpow.pop %v338
    %v340 = vmul.f32 %v337, 1.442695
    %v341 = vpow.pop %v340
    %v342 = vsel %vm329, %v339, 0.0
    %343 = vadd.xlane.f32.xlu0 %v342
    %v344 = vpop.xlane.xlu0 %343
    %v345 = vsel %vm329, %v341, 0.0
    %346 = vadd.xlane.f32.xlu0 %v345
    %v347 = vpop.xlane.xlu0 %346
    %v348 = vrcp.pop %v344
    %v349 = vmul.f32 %v339, %v348
    %v350 = vrcp.pop %v347
    %v351 = vmul.f32 %v341, %v350
    %354 = vrot.lane.b32.xlu0 %v35, 16
    %v355 = vpop.permute.xlu0 %354
    %356 = vrot.lane.b32.xlu0 %v36, 16
    %v357 = vpop.permute.xlu0 %356
    %v360 = vadd.f32 %v325, %v355
    %v361 = vadd.f32 %v326, %v357
    %vm362 = vcmask 261248
    %v363 = vsel %vm362, %v360, -inf
    %364 = vmax.xlane.f32.xlu0 %v363
    %v365 = vpop.xlane.xlu0 %364
    %v366 = vsel %vm362, %v361, -inf
    %367 = vmax.xlane.f32.xlu0 %v366
    %v368 = vpop.xlane.xlu0 %367
    %v369 = vsub.f32 %v360, %v365
    %v370 = vsub.f32 %v361, %v368
    %v371 = vmul.f32 %v369, 1.442695
    %v372 = vpow.pop %v371
    %v373 = vmul.f32 %v370, 1.442695
    %v374 = vpow.pop %v373
    %377 = vrot.lane.b32.xlu0 %v372, 112
    %v378 = vpop.permute.xlu0 %377
    %379 = vrot.lane.b32.xlu0 %v374, 112
    %v380 = vpop.permute.xlu0 %379
    %v383 = vsel %vm329, %v378, 0.0
    %384 = vadd.xlane.f32.xlu0 %v383
    %v385 = vpop.xlane.xlu0 %384
    %v386 = vsel %vm329, %v380, 0.0
    %387 = vadd.xlane.f32.xlu0 %v386
    %v388 = vpop.xlane.xlu0 %387
    %v389 = vrcp.pop %v385
    %v390 = vmul.f32 %v372, %v389
    %v391 = vrcp.pop %v388
    %v392 = vmul.f32 %v374, %v391
    %393 = vrot.lane.b32.xlu0 %v35, 32
    %v394 = vpop.permute.xlu0 %393
    %395 = vrot.lane.b32.xlu0 %v36, 32
    %v396 = vpop.permute.xlu0 %395
    %v399 = vadd.f32 %v325, %v394
    %v400 = vadd.f32 %v326, %v396
    %vm401 = vcmask 392448
    %v402 = vsel %vm401, %v399, -inf
    %403 = vmax.xlane.f32.xlu0 %v402
    %v404 = vpop.xlane.xlu0 %403
    %v405 = vsel %vm401, %v400, -inf
    %406 = vmax.xlane.f32.xlu0 %v405
    %v407 = vpop.xlane.xlu0 %406
    %v408 = vsub.f32 %v399, %v404
    %v409 = vsub.f32 %v400, %v407
    %v410 = vmul.f32 %v408, 1.442695
    %v411 = vpow.pop %v410
    %v412 = vmul.f32 %v409, 1.442695
    %v413 = vpow.pop %v412
    %416 = vrot.lane.b32.xlu0 %v411, 96
    %v417 = vpop.permute.xlu0 %416
    %418 = vrot.lane.b32.xlu0 %v413, 96
    %v419 = vpop.permute.xlu0 %418
    %v422 = vsel %vm329, %v417, 0.0
    %423 = vadd.xlane.f32.xlu0 %v422
    %v424 = vpop.xlane.xlu0 %423
    %v425 = vsel %vm329, %v419, 0.0
    %426 = vadd.xlane.f32.xlu0 %v425
    %v427 = vpop.xlane.xlu0 %426
    %v428 = vrcp.pop %v424
    %v429 = vmul.f32 %v411, %v428
    %v430 = vrcp.pop %v427
    %v431 = vmul.f32 %v413, %v430
    %432 = vrot.lane.b32.xlu0 %v35, 48
    %v433 = vpop.permute.xlu0 %432
    %434 = vrot.lane.b32.xlu0 %v36, 48
    %v435 = vpop.permute.xlu0 %434
    %v438 = vadd.f32 %v325, %v433
    %v439 = vadd.f32 %v326, %v435
    %vm440 = vcmask 523648
    %v441 = vsel %vm440, %v438, -inf
    %442 = vmax.xlane.f32.xlu0 %v441
    %v443 = vpop.xlane.xlu0 %442
    %v444 = vsel %vm440, %v439, -inf
    %445 = vmax.xlane.f32.xlu0 %v444
    %v446 = vpop.xlane.xlu0 %445
    %v447 = vsub.f32 %v438, %v443
    %v448 = vsub.f32 %v439, %v446
    %v449 = vmul.f32 %v447, 1.442695
    %v450 = vpow.pop %v449
    %v451 = vmul.f32 %v448, 1.442695
    %v452 = vpow.pop %v451
    %455 = vrot.lane.b32.xlu0 %v450, 80
    %v456 = vpop.permute.xlu0 %455
    %457 = vrot.lane.b32.xlu0 %v452, 80
    %v458 = vpop.permute.xlu0 %457
    %v461 = vsel %vm329, %v456, 0.0
    %462 = vadd.xlane.f32.xlu0 %v461
    %v463 = vpop.xlane.xlu0 %462
    %v464 = vsel %vm329, %v458, 0.0
    %465 = vadd.xlane.f32.xlu0 %v464
    %v466 = vpop.xlane.xlu0 %465
    %v467 = vrcp.pop %v463
    %v468 = vmul.f32 %v450, %v467
    %v469 = vrcp.pop %v466
    %v470 = vmul.f32 %v452, %v469
    %v471 = vsel %vm329, %v349, %v390
    %v472 = vsel %vm329, %v351, %v392
    %v473 = vsel %vm38, %v471, %v429
    %v474 = vsel %vm38, %v472, %v431
    %vm475 = vcmask 392192
    %v476 = vsel %vm475, %v473, %v468
    %v477 = vsel %vm475, %v474, %v470
    %vm478 = vcmask 523264
    %v480 = vsel %vm478, %v476, 0
    %v483 = vsel %vm478, %v477, 0
    %485 = vmatprep.subr.mxu0 0.0
    %486 = vmatpush1.msra.mxu0 %v214
    %487 = vmatprep.subr.mxu0 0.0
    %488 = vmatpush1.msra.mxu0 %v215
    %489 = vmatprep.subr.mxu0 0.0
    %490 = vmatpush1.msra.mxu0 %v216
    %491 = vmatprep.subr.mxu0 0.0
    %492 = vmatpush1.msra.mxu0 %v217
    %493 = vmatprep.subr.mxu0 0.0
    %494 = vmatpush1.msra.mxu0 %v218
    %495 = vmatprep.subr.mxu0 0.0
    %496 = vmatpush1.msra.mxu0 %v219
    %497 = vmatprep.subr.mxu0 0.0
    %498 = vmatpush1.msra.mxu0 %v220
    %499 = vmatprep.subr.mxu0 0.0
    %500 = vmatpush1.msra.mxu0 %v221
    %501 = vmatprep.subr.mxu0 0.0
    %502 = vmatpush1.msra.mxu0 0.0
    %503 = vmatprep.subr.mxu0 0.0
    %504 = vmatpush1.msra.mxu0 0.0
    %505 = vmatprep.subr.mxu0 0.0
    %506 = vmatpush1.msra.mxu0 0.0
    %507 = vmatprep.subr.mxu0 0.0
    %508 = vmatpush1.msra.mxu0 0.0
    %509 = vmatprep.subr.mxu0 0.0
    %510 = vmatpush1.msra.mxu0 0.0
    %511 = vmatprep.subr.mxu0 0.0
    %512 = vmatpush1.msra.mxu0 0.0
    %513 = vmatprep.subr.mxu0 0.0
    %514 = vmatpush1.msra.mxu0 0.0
    %515 = vmatprep.subr.mxu0 0.0
    %516 = vmatpush1.msra.mxu0 0.0
    %517 = vmatprep.subr.mxu0 0.0
    %518 = vmatpush1.msra.mxu0 0.0
    %519 = vmatprep.subr.mxu0 0.0
    %520 = vmatpush1.msra.mxu0 0.0
    %521 = vmatprep.subr.mxu0 0.0
    %522 = vmatpush1.msra.mxu0 0.0
    %523 = vmatprep.subr.mxu0 0.0
    %524 = vmatpush1.msra.mxu0 0.0
    %525 = vmatprep.subr.mxu0 0.0
    %526 = vmatpush1.msra.mxu0 0.0
    %527 = vmatprep.subr.mxu0 0.0
    %528 = vmatpush1.msra.mxu0 0.0
    %529 = vmatprep.subr.mxu0 0.0
    %530 = vmatpush1.msra.mxu0 0.0
    %531 = vmatprep.subr.mxu0 0.0
    %532 = vmatpush1.msra.mxu0 0.0
    %533 = vmatprep.subr.mxu0 0.0
    %534 = vmatpush1.msra.mxu0 0.0
    %535 = vmatprep.subr.mxu0 0.0
    %536 = vmatpush1.msra.mxu0 0.0
    %537 = vmatprep.subr.mxu0 0.0
    %538 = vmatpush1.msra.mxu0 0.0
    %539 = vmatprep.subr.mxu0 0.0
    %540 = vmatpush1.msra.mxu0 0.0
    %541 = vmatprep.subr.mxu0 0.0
    %542 = vmatpush1.msra.mxu0 0.0
    %543 = vmatprep.subr.mxu0 0.0
    %544 = vmatpush1.msra.mxu0 0.0
    %545 = vmatprep.subr.mxu0 0.0
    %546 = vmatpush1.msra.mxu0 0.0
    %547 = vmatprep.subr.mxu0 0.0
    %548 = vmatpush1.msra.mxu0 0.0
    %549 = vmatprep.mubr.f32.mxu0 0.0
    %550 = vmatmul.mubr.f32.gmra.mrb[0].mxu0 %v480
    %v551 = vpop.f32.mrb[0].mxu0
    %v552 = vadd.f32 0.0, %v551
    %v553 = vpop.f32.mrb[0].mxu0
    %554 = vmatprep.mubr.f32.mxu0 0.0
    %555 = vmatmul.mubr.f32.gmra.mrb[0].mxu0 %v483
    %v556 = vpop.f32.mrb[0].mxu0
    %v557 = vadd.f32 0.0, %v556
    %v558 = vpop.f32.mrb[0].mxu0
    %559 = vdwg.mxu0
    %v560 = vadd.f32 %v33, %v552
    %v561 = vadd.f32 %v34, %v557
    %v562 = vsel %vm38, %v560, 0.0
    %563 = vadd.xlane.f32.xlu0 %v562
    %v564 = vpop.xlane.xlu0 %563
    %v565 = vsel %vm38, %v561, 0.0
    %566 = vadd.xlane.f32.xlu0 %v565
    %v567 = vpop.xlane.xlu0 %566
    %v568 = vmul.f32 %v564, %v45
    %v569 = vmul.f32 %v567, %v45
    %v570 = vsub.f32 %v560, %v568
    %v571 = vsub.f32 %v561, %v569
    %v572 = vmul.f32 %v570, %v570
    %v573 = vmul.f32 %v571, %v571
    %v574 = vsel %vm38, %v572, 0.0
    %575 = vadd.xlane.f32.xlu0 %v574
    %v576 = vpop.xlane.xlu0 %575
    %v577 = vsel %vm38, %v573, 0.0
    %578 = vadd.xlane.f32.xlu0 %v577
    %v579 = vpop.xlane.xlu0 %578
    %v580 = vmul.f32 %v576, %v45
    %v581 = vmul.f32 %v579, %v45
    %v582 = vadd.f32 %v580, 1e-12
    %v583 = vadd.f32 %v581, 1e-12
    %v584 = vrsqrt.pop %v582
    %v585 = vrsqrt.pop %v583
    %v586 = vmul.f32 %v570, %v584
    %v587 = vmul.f32 %v571, %v585
    %v588 = vmul.f32 %v586, %v69
    %v589 = vmul.f32 %v587, %v69
    %v590 = vadd.f32 %v588, %v75
    %v591 = vadd.f32 %v589, %v75
    %v592 = vld [vmem:[%s4] sm:$0xff]
    %v593 = vld [vmem:[%s4 + $0x8] sm:$0xff]
    %v594 = vld [vmem:[%s4 + $0x10] sm:$0xff]
    %v595 = vld [vmem:[%s4 + $0x18] sm:$0xff]
    %v596 = vld [vmem:[%s5] sm:$0x1]
    %v598 = vlaneseq
    %v599 = vshrl.u32 %v598, 7
    %v600 = vsub.s32 0, %v599
    %v601 = vrot.slane %v596, %v600
    %v604 = vsel %vm38, %v590, 0
    %v607 = vsel %vm38, %v591, 0
    %609 = vmatprep.subr.mxu0 0.0
    %610 = vmatpush1.msra.mxu0 %v592
    %611 = vmatprep.subr.mxu0 0.0
    %612 = vmatpush1.msra.mxu0 %v593
    %613 = vmatprep.subr.mxu0 0.0
    %614 = vmatpush1.msra.mxu0 %v594
    %615 = vmatprep.subr.mxu0 0.0
    %616 = vmatpush1.msra.mxu0 %v595
    %617 = vmatprep.subr.mxu0 0.0
    %618 = vmatpush1.msra.mxu0 0.0
    %619 = vmatprep.subr.mxu0 0.0
    %620 = vmatpush1.msra.mxu0 0.0
    %621 = vmatprep.subr.mxu0 0.0
    %622 = vmatpush1.msra.mxu0 0.0
    %623 = vmatprep.subr.mxu0 0.0
    %624 = vmatpush1.msra.mxu0 0.0
    %625 = vmatprep.subr.mxu0 0.0
    %626 = vmatpush1.msra.mxu0 0.0
    %627 = vmatprep.subr.mxu0 0.0
    %628 = vmatpush1.msra.mxu0 0.0
    %629 = vmatprep.subr.mxu0 0.0
    %630 = vmatpush1.msra.mxu0 0.0
    %631 = vmatprep.subr.mxu0 0.0
    %632 = vmatpush1.msra.mxu0 0.0
    %633 = vmatprep.subr.mxu0 0.0
    %634 = vmatpush1.msra.mxu0 0.0
    %635 = vmatprep.subr.mxu0 0.0
    %636 = vmatpush1.msra.mxu0 0.0
    %637 = vmatprep.subr.mxu0 0.0
    %638 = vmatpush1.msra.mxu0 0.0
    %639 = vmatprep.subr.mxu0 0.0
    %640 = vmatpush1.msra.mxu0 0.0
    %641 = vmatprep.subr.mxu0 0.0
    %642 = vmatpush1.msra.mxu0 0.0
    %643 = vmatprep.subr.mxu0 0.0
    %644 = vmatpush1.msra.mxu0 0.0
    %645 = vmatprep.subr.mxu0 0.0
    %646 = vmatpush1.msra.mxu0 0.0
    %647 = vmatprep.subr.mxu0 0.0
    %648 = vmatpush1.msra.mxu0 0.0
    %649 = vmatprep.subr.mxu0 0.0
    %650 = vmatpush1.msra.mxu0 0.0
    %651 = vmatprep.subr.mxu0 0.0
    %652 = vmatpush1.msra.mxu0 0.0
    %653 = vmatprep.subr.mxu0 0.0
    %654 = vmatpush1.msra.mxu0 0.0
    %655 = vmatprep.subr.mxu0 0.0
    %656 = vmatpush1.msra.mxu0 0.0
    %657 = vmatprep.subr.mxu0 0.0
    %658 = vmatpush1.msra.mxu0 0.0
    %659 = vmatprep.subr.mxu0 0.0
    %660 = vmatpush1.msra.mxu0 0.0
    %661 = vmatprep.subr.mxu0 0.0
    %662 = vmatpush1.msra.mxu0 0.0
    %663 = vmatprep.subr.mxu0 0.0
    %664 = vmatpush1.msra.mxu0 0.0
    %665 = vmatprep.subr.mxu0 0.0
    %666 = vmatpush1.msra.mxu0 0.0
    %667 = vmatprep.subr.mxu0 0.0
    %668 = vmatpush1.msra.mxu0 0.0
    %669 = vmatprep.subr.mxu0 0.0
    %670 = vmatpush1.msra.mxu0 0.0
    %671 = vmatprep.subr.mxu0 0.0
    %672 = vmatpush1.msra.mxu0 0.0
    %673 = vmatprep.mubr.f32.mxu0 0.0
    %674 = vmatmul.mubr.f32.gmra.mrb[0].mxu0 %v604
    %v675 = vpop.f32.mrb[0].mxu0
    %v676 = vadd.f32 %v601, %v675
    %v677 = vpop.f32.mrb[0].mxu0
    %678 = vmatprep.mubr.f32.mxu0 0.0
    %679 = vmatmul.mubr.f32.gmra.mrb[0].mxu0 %v607
    %v680 = vpop.f32.mrb[0].mxu0
    %v681 = vadd.f32 %v601, %v680
    %v682 = vpop.f32.mrb[0].mxu0
    %683 = vdwg.mxu0
    %v684 = vmul.f32 %v676, 0.5
    %v685 = vmul.f32 %v681, 0.5
    %v686 = vrcp.pop 1.4142135
    %v687 = vmul.f32 %v676, %v686
    %v688 = vmul.f32 %v681, %v686
    %v689 = verf.f32.pop %v687
    %v690 = verf.f32.pop %v688
    %v691 = vadd.f32 %v689, 1.0
    %v692 = vadd.f32 %v690, 1.0
    %v693 = vmul.f32 %v684, %v691
    %v694 = vmul.f32 %v685, %v692
    %v695 = vld [vmem:[%s6] sm:$0xff]
    %v696 = vld [vmem:[%s6 + $0x8] sm:$0xff]
    %v697 = vld [vmem:[%s6 + $0x10] sm:$0xff]
    %v698 = vld [vmem:[%s6 + $0x18] sm:$0xff]
    %v699 = vld [vmem:[%s6 + $0x20] sm:$0xff]
    %v700 = vld [vmem:[%s6 + $0x28] sm:$0xff]
    %v701 = vld [vmem:[%s6 + $0x30] sm:$0xff]
    %v702 = vld [vmem:[%s6 + $0x38] sm:$0xff]
    %v703 = vld [vmem:[%s7] sm:$0x1]
    %v705 = vlaneseq
    %v706 = vshrl.u32 %v705, 7
    %v707 = vsub.s32 0, %v706
    %v708 = vrot.slane %v703, %v707
    %v711 = vsel %vm478, %v693, 0
    %v714 = vsel %vm478, %v694, 0
    %716 = vmatprep.subr.mxu0 0.0
    %717 = vmatpush1.msra.mxu0 %v695
    %718 = vmatprep.subr.mxu0 0.0
    %719 = vmatpush1.msra.mxu0 %v696
    %720 = vmatprep.subr.mxu0 0.0
    %721 = vmatpush1.msra.mxu0 %v697
    %722 = vmatprep.subr.mxu0 0.0
    %723 = vmatpush1.msra.mxu0 %v698
    %724 = vmatprep.subr.mxu0 0.0
    %725 = vmatpush1.msra.mxu0 %v699
    %726 = vmatprep.subr.mxu0 0.0
    %727 = vmatpush1.msra.mxu0 %v700
    %728 = vmatprep.subr.mxu0 0.0
    %729 = vmatpush1.msra.mxu0 %v701
    %730 = vmatprep.subr.mxu0 0.0
    %731 = vmatpush1.msra.mxu0 %v702
    %732 = vmatprep.subr.mxu0 0.0
    %733 = vmatpush1.msra.mxu0 0.0
    %734 = vmatprep.subr.mxu0 0.0
    %735 = vmatpush1.msra.mxu0 0.0
    %736 = vmatprep.subr.mxu0 0.0
    %737 = vmatpush1.msra.mxu0 0.0
    %738 = vmatprep.subr.mxu0 0.0
    %739 = vmatpush1.msra.mxu0 0.0
    %740 = vmatprep.subr.mxu0 0.0
    %741 = vmatpush1.msra.mxu0 0.0
    %742 = vmatprep.subr.mxu0 0.0
    %743 = vmatpush1.msra.mxu0 0.0
    %744 = vmatprep.subr.mxu0 0.0
    %745 = vmatpush1.msra.mxu0 0.0
    %746 = vmatprep.subr.mxu0 0.0
    %747 = vmatpush1.msra.mxu0 0.0
    %748 = vmatprep.subr.mxu0 0.0
    %749 = vmatpush1.msra.mxu0 0.0
    %750 = vmatprep.subr.mxu0 0.0
    %751 = vmatpush1.msra.mxu0 0.0
    %752 = vmatprep.subr.mxu0 0.0
    %753 = vmatpush1.msra.mxu0 0.0
    %754 = vmatprep.subr.mxu0 0.0
    %755 = vmatpush1.msra.mxu0 0.0
    %756 = vmatprep.subr.mxu0 0.0
    %757 = vmatpush1.msra.mxu0 0.0
    %758 = vmatprep.subr.mxu0 0.0
    %759 = vmatpush1.msra.mxu0 0.0
    %760 = vmatprep.subr.mxu0 0.0
    %761 = vmatpush1.msra.mxu0 0.0
    %762 = vmatprep.subr.mxu0 0.0
    %763 = vmatpush1.msra.mxu0 0.0
    %764 = vmatprep.subr.mxu0 0.0
    %765 = vmatpush1.msra.mxu0 0.0
    %766 = vmatprep.subr.mxu0 0.0
    %767 = vmatpush1.msra.mxu0 0.0
    %768 = vmatprep.subr.mxu0 0.0
    %769 = vmatpush1.msra.mxu0 0.0
    %770 = vmatprep.subr.mxu0 0.0
    %771 = vmatpush1.msra.mxu0 0.0
    %772 = vmatprep.subr.mxu0 0.0
    %773 = vmatpush1.msra.mxu0 0.0
    %774 = vmatprep.subr.mxu0 0.0
    %775 = vmatpush1.msra.mxu0 0.0
    %776 = vmatprep.subr.mxu0 0.0
    %777 = vmatpush1.msra.mxu0 0.0
    %778 = vmatprep.subr.mxu0 0.0
    %779 = vmatpush1.msra.mxu0 0.0
    %780 = vmatprep.mubr.f32.mxu0 0.0
    %781 = vmatmul.mubr.f32.gmra.mrb[0].mxu0 %v711
    %v782 = vpop.f32.mrb[0].mxu0
    %v783 = vadd.f32 %v708, %v782
    %v784 = vpop.f32.mrb[0].mxu0
    %785 = vmatprep.mubr.f32.mxu0 0.0
    %786 = vmatmul.mubr.f32.gmra.mrb[0].mxu0 %v714
    %v787 = vpop.f32.mrb[0].mxu0
    %v788 = vadd.f32 %v708, %v787
    %v789 = vpop.f32.mrb[0].mxu0
    %790 = vdwg.mxu0
    %v791 = vadd.f32 %v590, %v783
    %v792 = vadd.f32 %v591, %v788
    %v793 = vsel %vm38, %v791, 0.0
    %794 = vadd.xlane.f32.xlu0 %v793
    %v795 = vpop.xlane.xlu0 %794
    %v796 = vsel %vm38, %v792, 0.0
    %797 = vadd.xlane.f32.xlu0 %v796
    %v798 = vpop.xlane.xlu0 %797
    %v799 = vmul.f32 %v795, %v45
    %v800 = vmul.f32 %v798, %v45
    %v801 = vsub.f32 %v791, %v799
    %v802 = vsub.f32 %v792, %v800
    %v803 = vmul.f32 %v801, %v801
    %v804 = vmul.f32 %v802, %v802
    %v805 = vsel %vm38, %v803, 0.0
    %806 = vadd.xlane.f32.xlu0 %v805
    %v807 = vpop.xlane.xlu0 %806
    %v808 = vsel %vm38, %v804, 0.0
    %809 = vadd.xlane.f32.xlu0 %v808
    %v810 = vpop.xlane.xlu0 %809
    %v811 = vmul.f32 %v807, %v45
    %v812 = vmul.f32 %v810, %v45
    %v813 = vadd.f32 %v811, 1e-12
    %v814 = vadd.f32 %v812, 1e-12
    %v815 = vrsqrt.pop %v813
    %v816 = vrsqrt.pop %v814
    %v817 = vmul.f32 %v801, %v815
    %v818 = vmul.f32 %v802, %v816
    %v819 = vlaneseq
    %v820 = vshrl.u32 %v819, 7
    %v821 = vsub.s32 2, %v820
    %v822 = vrot.slane %v37, %v821
    %v823 = vmul.f32 %v817, %v822
    %v824 = vmul.f32 %v818, %v822
    %v825 = vlaneseq
    %v826 = vshrl.u32 %v825, 7
    %v827 = vsub.s32 3, %v826
    %v828 = vrot.slane %v37, %v827
    %v829 = vadd.f32 %v823, %v828
    %v830 = vadd.f32 %v824, %v828
    %831 = vst.msk [vmem:[#allocation2] sm:$0xff] %vm38, %v829
    %832 = vst.msk [vmem:[#allocation2 + $0x8] sm:$0xff] %vm38, %v830
    // Predicated region
    $region38: #{tpu_custom_call.1} parent=1 // pred_check
      _
    $region39: #{tpu_custom_call.1} parent=1 // pred_check_branch
      %834 = sbr.rel (0) target = $region41
    $region40: #{tpu_custom_call.1} parent=1 // pred_region
      %s836 = ssub.s32 256, 256
      %837 = vsyncadd [#allocation3], %s836
      %s838 = sshll.u32 [#allocation2], 4
      %s839 = int_to_ptr.vmem [resolvable:$true] %s838
      %844 = dma.vmem_to_hbm [thread:$0]  %s839, 256, %s9, [#allocation3], 128, 128, 8
    $region41: #{tpu_custom_call.1} parent=1 // pred_fallthru
      _
    // Predicated region
    $region42: #{tpu_custom_call.1} parent=1 // pred_check
      _
    $region43: #{tpu_custom_call.1} parent=1 // pred_check_branch
      %846 = sbr.rel (0) target = $region45
    $region44: #{tpu_custom_call.1} parent=1 // pred_region
      %847 = dma.done [#allocation3], 256
    $region45: #{tpu_custom_call.1} parent=1 // pred_fallthru
      _
    %848 = vsyncpa [#allocation3], 1

</llo_original>
